<compile_context>
chip_gen: v7x
topology: tpu7x:2x2x1
jax: 0.10.0
libtpu: 0.0.40
codegen_flags: <defaults>
</compile_context>

<pallas_src>
from functools import partial

import jax
import jax.numpy as jnp
from jax.experimental import pallas as pl
from jax.experimental.pallas import tpu as pltpu

EPS = 1e-5
NEG_SLOPE = 0.2
GROUPS = 2  # GroupNorm(2, C_) in BasicConv2d


def _convsc_kernel(cols_ref, w_ref, p_ref, o_ref, *, Cout, nb, HW):
    # cols_ref: (1, K, nb*HW) bf16 -- im2col; frames side-by-side on the lane axis
    # w_ref:    (Cout, K)     bf16 -- conv weight, (tap, cin) packed on K
    # p_ref:    (Cout, 3)     f32  -- packed [bias | gamma | beta]
    # o_ref:    (1, Cout, nb*HW)   f32
    w = w_ref[...]
    bias = p_ref[:, 0:1]
    gamma = p_ref[:, 1:2]
    beta = p_ref[:, 2:3]

    # One wide matmul for all frames of this step (f32 accumulation on the MXU).
    acc = jnp.dot(w, cols_ref[0], preferred_element_type=jnp.float32)  # (Cout, nb*HW)
    acc = acc + bias

    cg = Cout // GROUPS
    inv_cnt = 1.0 / float(cg * HW)

    # GroupNorm + LeakyReLU epilogue. Frame slices are static lane ranges
    # (multiples of 128): no relayout, stores stay lane-dense and unmasked.
    for j in range(nb):
        sl = acc[:, j * HW:(j + 1) * HW]                     # (Cout, HW)
        rs = jnp.sum(sl, axis=1, keepdims=True)              # (Cout, 1)
        rsq = jnp.sum(sl * sl, axis=1, keepdims=True)        # (Cout, 1)
        for g in range(GROUPS):
            c0, c1 = g * cg, (g + 1) * cg
            s = jnp.sum(rs[c0:c1])
            sq = jnp.sum(rsq[c0:c1])
            mean = s * inv_cnt
            var = sq * inv_cnt - mean * mean                 # single-pass variance
            inv_std = jax.lax.rsqrt(var + EPS)               # EUP slot
            scale = gamma[c0:c1] * inv_std                   # (cg, 1)
            shift = beta[c0:c1] - mean * scale               # (cg, 1)
            y = sl[c0:c1] * scale + shift                    # fused scale/shift
            y = jnp.where(y > 0, y, NEG_SLOPE * y)           # LeakyReLU(0.2)
            o_ref[0, c0:c1, j * HW:(j + 1) * HW] = y.astype(o_ref.dtype)


def convsc_forward(x, w, b, gamma, beta):
    """x: (B, T, C, H, W) float32 (NCHW per frame, like PyTorch).
       w: (3, 3, Cin, Cout), b/gamma/beta: (Cout,).  stride=1, pad=1 path."""
    B, T, C, H, W = x.shape
    Cout = w.shape[3]
    assert Cout % GROUPS == 0
    N = B * T
    HW = H * W
    K = 9 * C

    # --- host-side glue: channels-first im2col, taps packed on the K axis ---
    z = x.reshape(N, C, H, W)
    zp = jnp.pad(z, ((0, 0), (0, 0), (1, 1), (1, 1)))            # (N, C, H+2, W+2)
    cols = jnp.stack(
        [zp[:, :, dy:dy + H, dx:dx + W].reshape(N, C, HW)
         for dy in range(3) for dx in range(3)],
        axis=1,
    ).reshape(N, K, HW).astype(jnp.bfloat16)                     # (N, 9C, HW)
    # weight (3,3,Cin,Cout) -> (Cout, 9*Cin) with the same (tap, channel) order
    w_t = jnp.transpose(w.reshape(K, Cout)).astype(jnp.bfloat16)  # (Cout, 9C)
    params = jnp.stack([b, gamma, beta], axis=1).astype(jnp.float32)  # (Cout, 3)

    # --- block sizing: double-buffered VMEM budget (safe on v7x's 64 MiB VMEM),
    #     unroll-bounded epilogue, and >= 2 parallel steps for v7x's 2 TCs ---
    in_bytes_f = K * HW * 2                 # bf16 im2col per frame
    out_bytes_f = Cout * HW * 4             # f32 output per frame
    budget = 24 << 20
    nb = max(1, min(N, 32, budget // (2 * (in_bytes_f + out_bytes_f))))
    if N >= 2:
        nb = min(nb, (N + 1) // 2)          # grid >= 2 steps -> both TCs on v7x
    n_steps = -(-N // nb)
    N_pad = n_steps * nb
    if N_pad != N:
        cols = jnp.pad(cols, ((0, N_pad - N), (0, 0), (0, 0)))
    # frames of one step go side-by-side on the lane axis: (n_steps, K, nb*HW)
    cols = cols.reshape(n_steps, nb, K, HW).transpose(0, 2, 1, 3).reshape(
        n_steps, K, nb * HW)

    in_blk = K * nb * HW * 2
    out_blk = Cout * nb * HW * 4
    vmem_limit = int(min(56 << 20, max(32 << 20, 2 * (in_blk + out_blk) + (4 << 20))))

    out = pl.pallas_call(
        partial(_convsc_kernel, Cout=Cout, nb=nb, HW=HW),
        out_shape=jax.ShapeDtypeStruct((n_steps, Cout, nb * HW), jnp.float32),
        grid_spec=pltpu.PrefetchScalarGridSpec(
            num_scalar_prefetch=0,
            grid=(n_steps,),
            in_specs=[
                pl.BlockSpec((1, K, nb * HW), lambda i: (i, 0, 0)),
                # parameters: constant index_map -> stay VMEM-resident
                pl.BlockSpec((Cout, K), lambda i: (0, 0)),
                pl.BlockSpec((Cout, 3), lambda i: (0, 0)),
            ],
            out_specs=pl.BlockSpec((1, Cout, nb * HW), lambda i: (i, 0, 0)),
        ),
        compiler_params=pltpu.CompilerParams(
            dimension_semantics=("parallel",),
            vmem_limit_bytes=vmem_limit),
    )(cols, w_t, params)

    # (n_steps, Cout, nb, HW) -> frames outermost (small host-side copy under jit)
    out = out.reshape(n_steps, Cout, nb, HW).transpose(0, 2, 1, 3)
    out = out.reshape(N_pad, Cout, HW)[:N]
    return out.reshape(B, T, Cout, H, W)


def convsc_reference(x, w, b, gamma, beta):
    """Pure-JAX reference matching PyTorch ConvSC semantics (stride=1)."""
    B, T, C, H, W = x.shape
    Cout = w.shape[3]
    z = x.reshape(B * T, C, H, W)
    w_oihw = jnp.transpose(w, (3, 2, 0, 1))  # (Cout, Cin, 3, 3)
    y = jax.lax.conv_general_dilated(
        z, w_oihw, window_strides=(1, 1), padding=((1, 1), (1, 1)),
        dimension_numbers=("NCHW", "OIHW", "NCHW"),
        precision=jax.lax.Precision.HIGHEST)
    y = y + b[None, :, None, None]
    N, Co, Ho, Wo = y.shape
    yg = y.reshape(N, GROUPS, Co // GROUPS, Ho, Wo)
    mean = yg.mean(axis=(2, 3, 4), keepdims=True)
    var = yg.var(axis=(2, 3, 4), keepdims=True)
    yn = ((yg - mean) / jnp.sqrt(var + EPS)).reshape(N, Co, Ho, Wo)
    yn = yn * gamma[None, :, None, None] + beta[None, :, None, None]
    out = jnp.where(yn > 0, yn, NEG_SLOPE * yn)
    return out.reshape(B, T, Co, Ho, Wo)


if __name__ == "__main__":
    # in_shape = (T, C, H, W) = (2, 4, 16, 16), out_shape = (2, 8, 16, 16)
    #   -> W_ == W  => transpose=False, stride=1
    B, T, C, H, W = 2, 2, 4, 16, 16
    Cout = 8

    key = jax.random.PRNGKey(0)
    kx, kw, kb, kg, kbe = jax.random.split(key, 5)
    x = jax.random.normal(kx, (B, T, C, H, W), jnp.float32)
    w = jax.random.normal(kw, (3, 3, C, Cout), jnp.float32) * 0.1
    b = jax.random.normal(kb, (Cout,), jnp.float32) * 0.1
    gamma = 1.0 + 0.1 * jax.random.normal(kg, (Cout,), jnp.float32)
    beta = 0.1 * jax.random.normal(kbe, (Cout,), jnp.float32)

    fwd = jax.jit(convsc_forward)
    y = jax.block_until_ready(fwd(x, w, b, gamma, beta))
    assert y.shape == (B, T, Cout, H, W), y.shape

    # Strict check: reference run on the same bf16-rounded matmul operands
    # (isolates the kernel's algorithm from the bf16 cast).
    xq = x.astype(jnp.bfloat16).astype(jnp.float32)
    wq = w.astype(jnp.bfloat16).astype(jnp.float32)
    y_ref_q = convsc_reference(xq, wq, b, gamma, beta)
    err_q = float(jnp.max(jnp.abs(y - y_ref_q)))
    assert jnp.allclose(y, y_ref_q, rtol=1e-3, atol=1e-3), err_q

    # Loose check against the full-f32 reference (bf16 operands, f32 accumulation).
    y_ref = convsc_reference(x, w, b, gamma, beta)
    err = float(jnp.max(jnp.abs(y - y_ref)))
    assert jnp.allclose(y, y_ref, rtol=5e-2, atol=5e-2), err

    print("KERNEL_OK")
</pallas_src>

<mosaic_0001>
module attributes {stable_mosaic.version = 11 : i64} {
  func.func @_convsc_kernel(%arg0: i32, %arg1: memref<1x36x512xbf16, #tpu.memory_space<vmem>>, %arg2: memref<8x36xbf16, #tpu.memory_space<vmem>>, %arg3: memref<8x3xf32, #tpu.memory_space<vmem>>, %arg4: memref<1x8x512xf32, #tpu.memory_space<vmem>>) attributes {dimension_semantics = [#tpu.dimension_semantics<parallel>], iteration_bounds = array<i64: 2>, scalar_prefetch = 0 : i64, scratch_operands = 0 : i64, tpu.core_type = #tpu.core_type<tc>, window_params = [{transform_indices = @transform_0, window_bounds = array<i64: 1, 36, 512>}, {pipeline_mode = #tpu.pipeline_mode<synchronous>, transform_indices = @transform_1, window_bounds = array<i64: 8, 36>}, {pipeline_mode = #tpu.pipeline_mode<synchronous>, transform_indices = @transform_2, window_bounds = array<i64: 8, 3>}, {transform_indices = @transform_3, window_bounds = array<i64: 1, 8, 512>}]} {
    %c0 = arith.constant 0 : index
    %c0_0 = arith.constant 0 : index
    %0 = vector.load %arg2[%c0, %c0_0] : memref<8x36xbf16, #tpu.memory_space<vmem>>, vector<8x36xbf16>
    %c0_1 = arith.constant 0 : index
    %c0_2 = arith.constant 0 : index
    %1 = vector.load %arg3[%c0_1, %c0_2] : memref<8x3xf32, #tpu.memory_space<vmem>>, vector<8x1xf32>
    %c0_3 = arith.constant 0 : index
    %c1 = arith.constant 1 : index
    %2 = vector.load %arg3[%c0_3, %c1] : memref<8x3xf32, #tpu.memory_space<vmem>>, vector<8x1xf32>
    %c0_4 = arith.constant 0 : index
    %c2 = arith.constant 2 : index
    %3 = vector.load %arg3[%c0_4, %c2] : memref<8x3xf32, #tpu.memory_space<vmem>>, vector<8x1xf32>
    %c0_5 = arith.constant 0 : index
    %c0_6 = arith.constant 0 : index
    %c0_7 = arith.constant 0 : index
    %4 = vector.load %arg1[%c0_5, %c0_6, %c0_7] : memref<1x36x512xbf16, #tpu.memory_space<vmem>>, vector<1x36x512xbf16>
    %5 = vector.shape_cast %4 : vector<1x36x512xbf16> to vector<36x512xbf16>
    %cst = arith.constant dense<0.000000e+00> : vector<8x512xf32>
    %6 = tpu.matmul %0, %5, %cst {dimension_numbers = #tpu.dot_dimension_numbers<[1], [0], [0], [1], [0, 0, 1, 1], [], []>} : vector<8x36xbf16>, vector<36x512xbf16>, vector<8x512xf32> -> vector<8x512xf32>
    %7 = vector.broadcast %1 : vector<8x1xf32> to vector<8x512xf32>
    %8 = arith.addf %6, %7 : vector<8x512xf32>
    %9 = vector.extract_strided_slice %8 {offsets = [0, 0], sizes = [8, 256], strides = [1, 1]} : vector<8x512xf32> to vector<8x256xf32>
    %cst_8 = arith.constant dense<0.000000e+00> : vector<8xf32>
    %10 = vector.multi_reduction <add>, %9, %cst_8 [1] : vector<8x256xf32> to vector<8xf32>
    %11 = vector.shape_cast %10 : vector<8xf32> to vector<8x1xf32>
    %12 = arith.mulf %9, %9 : vector<8x256xf32>
    %cst_9 = arith.constant dense<0.000000e+00> : vector<8xf32>
    %13 = vector.multi_reduction <add>, %12, %cst_9 [1] : vector<8x256xf32> to vector<8xf32>
    %14 = vector.shape_cast %13 : vector<8xf32> to vector<8x1xf32>
    %15 = vector.extract_strided_slice %11 {offsets = [0, 0], sizes = [4, 1], strides = [1, 1]} : vector<8x1xf32> to vector<4x1xf32>
    %16 = vector.shape_cast %15 : vector<4x1xf32> to vector<1x4x1xf32>
    %cst_10 = arith.constant dense<0.000000e+00> : vector<1xf32>
    %17 = vector.multi_reduction <add>, %16, %cst_10 [1, 2] : vector<1x4x1xf32> to vector<1xf32>
    %18 = vector.shape_cast %17 : vector<1xf32> to vector<1x1x1xf32>
    %19 = vector.extract %18[0, 0, 0] : f32 from vector<1x1x1xf32>
    %20 = vector.extract_strided_slice %14 {offsets = [0, 0], sizes = [4, 1], strides = [1, 1]} : vector<8x1xf32> to vector<4x1xf32>
    %21 = vector.shape_cast %20 : vector<4x1xf32> to vector<1x4x1xf32>
    %cst_11 = arith.constant dense<0.000000e+00> : vector<1xf32>
    %22 = vector.multi_reduction <add>, %21, %cst_11 [1, 2] : vector<1x4x1xf32> to vector<1xf32>
    %23 = vector.shape_cast %22 : vector<1xf32> to vector<1x1x1xf32>
    %24 = vector.extract %23[0, 0, 0] : f32 from vector<1x1x1xf32>
    %cst_12 = arith.constant 9.765625E-4 : f32
    %25 = arith.mulf %19, %cst_12 : f32
    %cst_13 = arith.constant 9.765625E-4 : f32
    %26 = arith.mulf %24, %cst_13 : f32
    %27 = arith.mulf %25, %25 : f32
    %28 = arith.subf %26, %27 : f32
    %cst_14 = arith.constant 9.99999974E-6 : f32
    %29 = arith.addf %28, %cst_14 : f32
    %30 = math.rsqrt %29 : f32
    %31 = vector.extract_strided_slice %2 {offsets = [0, 0], sizes = [4, 1], strides = [1, 1]} : vector<8x1xf32> to vector<4x1xf32>
    %32 = vector.broadcast %30 : f32 to vector<4x1xf32>
    %33 = arith.mulf %31, %32 : vector<4x1xf32>
    %34 = vector.extract_strided_slice %3 {offsets = [0, 0], sizes = [4, 1], strides = [1, 1]} : vector<8x1xf32> to vector<4x1xf32>
    %35 = vector.broadcast %25 : f32 to vector<4x1xf32>
    %36 = arith.mulf %35, %33 : vector<4x1xf32>
    %37 = arith.subf %34, %36 : vector<4x1xf32>
    %38 = vector.extract_strided_slice %9 {offsets = [0, 0], sizes = [4, 256], strides = [1, 1]} : vector<8x256xf32> to vector<4x256xf32>
    %39 = vector.broadcast %33 : vector<4x1xf32> to vector<4x256xf32>
    %40 = arith.mulf %38, %39 : vector<4x256xf32>
    %41 = vector.broadcast %37 : vector<4x1xf32> to vector<4x256xf32>
    %42 = arith.addf %40, %41 : vector<4x256xf32>
    %cst_15 = arith.constant 0.000000e+00 : f32
    %43 = vector.broadcast %cst_15 : f32 to vector<4x256xf32>
    %44 = arith.cmpf ogt, %42, %43 : vector<4x256xf32>
    %cst_16 = arith.constant 2.000000e-01 : f32
    %45 = vector.broadcast %cst_16 : f32 to vector<4x256xf32>
    %46 = arith.mulf %45, %42 : vector<4x256xf32>
    %47 = arith.select %44, %42, %46 : vector<4x256xi1>, vector<4x256xf32>
    %c0_17 = arith.constant 0 : index
    %c0_18 = arith.constant 0 : index
    %c0_19 = arith.constant 0 : index
    %48 = vector.load %arg4[%c0_17, %c0_18, %c0_19] : memref<1x8x512xf32, #tpu.memory_space<vmem>>, vector<1x4x256xf32>
    %49 = vector.shape_cast %48 : vector<1x4x256xf32> to vector<4x256xf32>
    %50 = vector.shape_cast %47 : vector<4x256xf32> to vector<1x4x256xf32>
    tpu.vector_store %arg4[%c0_17, %c0_18, %c0_19], %50 {strides = array<i32>} : memref<1x8x512xf32, #tpu.memory_space<vmem>>, vector<1x4x256xf32>,
    %51 = vector.extract_strided_slice %11 {offsets = [4, 0], sizes = [4, 1], strides = [1, 1]} : vector<8x1xf32> to vector<4x1xf32>
    %52 = vector.shape_cast %51 : vector<4x1xf32> to vector<1x4x1xf32>
    %cst_20 = arith.constant dense<0.000000e+00> : vector<1xf32>
    %53 = vector.multi_reduction <add>, %52, %cst_20 [1, 2] : vector<1x4x1xf32> to vector<1xf32>
    %54 = vector.shape_cast %53 : vector<1xf32> to vector<1x1x1xf32>
    %55 = vector.extract %54[0, 0, 0] : f32 from vector<1x1x1xf32>
    %56 = vector.extract_strided_slice %14 {offsets = [4, 0], sizes = [4, 1], strides = [1, 1]} : vector<8x1xf32> to vector<4x1xf32>
    %57 = vector.shape_cast %56 : vector<4x1xf32> to vector<1x4x1xf32>
    %cst_21 = arith.constant dense<0.000000e+00> : vector<1xf32>
    %58 = vector.multi_reduction <add>, %57, %cst_21 [1, 2] : vector<1x4x1xf32> to vector<1xf32>
    %59 = vector.shape_cast %58 : vector<1xf32> to vector<1x1x1xf32>
    %60 = vector.extract %59[0, 0, 0] : f32 from vector<1x1x1xf32>
    %cst_22 = arith.constant 9.765625E-4 : f32
    %61 = arith.mulf %55, %cst_22 : f32
    %cst_23 = arith.constant 9.765625E-4 : f32
    %62 = arith.mulf %60, %cst_23 : f32
    %63 = arith.mulf %61, %61 : f32
    %64 = arith.subf %62, %63 : f32
    %cst_24 = arith.constant 9.99999974E-6 : f32
    %65 = arith.addf %64, %cst_24 : f32
    %66 = math.rsqrt %65 : f32
    %67 = vector.extract_strided_slice %2 {offsets = [4, 0], sizes = [4, 1], strides = [1, 1]} : vector<8x1xf32> to vector<4x1xf32>
    %68 = vector.broadcast %66 : f32 to vector<4x1xf32>
    %69 = arith.mulf %67, %68 : vector<4x1xf32>
    %70 = vector.extract_strided_slice %3 {offsets = [4, 0], sizes = [4, 1], strides = [1, 1]} : vector<8x1xf32> to vector<4x1xf32>
    %71 = vector.broadcast %61 : f32 to vector<4x1xf32>
    %72 = arith.mulf %71, %69 : vector<4x1xf32>
    %73 = arith.subf %70, %72 : vector<4x1xf32>
    %74 = vector.extract_strided_slice %9 {offsets = [4, 0], sizes = [4, 256], strides = [1, 1]} : vector<8x256xf32> to vector<4x256xf32>
    %75 = vector.broadcast %69 : vector<4x1xf32> to vector<4x256xf32>
    %76 = arith.mulf %74, %75 : vector<4x256xf32>
    %77 = vector.broadcast %73 : vector<4x1xf32> to vector<4x256xf32>
    %78 = arith.addf %76, %77 : vector<4x256xf32>
    %cst_25 = arith.constant 0.000000e+00 : f32
    %79 = vector.broadcast %cst_25 : f32 to vector<4x256xf32>
    %80 = arith.cmpf ogt, %78, %79 : vector<4x256xf32>
    %cst_26 = arith.constant 2.000000e-01 : f32
    %81 = vector.broadcast %cst_26 : f32 to vector<4x256xf32>
    %82 = arith.mulf %81, %78 : vector<4x256xf32>
    %83 = arith.select %80, %78, %82 : vector<4x256xi1>, vector<4x256xf32>
    %c0_27 = arith.constant 0 : index
    %c4 = arith.constant 4 : index
    %c0_28 = arith.constant 0 : index
    %84 = vector.load %arg4[%c0_27, %c4, %c0_28] : memref<1x8x512xf32, #tpu.memory_space<vmem>>, vector<1x4x256xf32>
    %85 = vector.shape_cast %84 : vector<1x4x256xf32> to vector<4x256xf32>
    %86 = vector.shape_cast %83 : vector<4x256xf32> to vector<1x4x256xf32>
    tpu.vector_store %arg4[%c0_27, %c4, %c0_28], %86 {strides = array<i32>} : memref<1x8x512xf32, #tpu.memory_space<vmem>>, vector<1x4x256xf32>,
    %87 = vector.extract_strided_slice %8 {offsets = [0, 256], sizes = [8, 256], strides = [1, 1]} : vector<8x512xf32> to vector<8x256xf32>
    %cst_29 = arith.constant dense<0.000000e+00> : vector<8xf32>
    %88 = vector.multi_reduction <add>, %87, %cst_29 [1] : vector<8x256xf32> to vector<8xf32>
    %89 = vector.shape_cast %88 : vector<8xf32> to vector<8x1xf32>
    %90 = arith.mulf %87, %87 : vector<8x256xf32>
    %cst_30 = arith.constant dense<0.000000e+00> : vector<8xf32>
    %91 = vector.multi_reduction <add>, %90, %cst_30 [1] : vector<8x256xf32> to vector<8xf32>
    %92 = vector.shape_cast %91 : vector<8xf32> to vector<8x1xf32>
    %93 = vector.extract_strided_slice %89 {offsets = [0, 0], sizes = [4, 1], strides = [1, 1]} : vector<8x1xf32> to vector<4x1xf32>
    %94 = vector.shape_cast %93 : vector<4x1xf32> to vector<1x4x1xf32>
    %cst_31 = arith.constant dense<0.000000e+00> : vector<1xf32>
    %95 = vector.multi_reduction <add>, %94, %cst_31 [1, 2] : vector<1x4x1xf32> to vector<1xf32>
    %96 = vector.shape_cast %95 : vector<1xf32> to vector<1x1x1xf32>
    %97 = vector.extract %96[0, 0, 0] : f32 from vector<1x1x1xf32>
    %98 = vector.extract_strided_slice %92 {offsets = [0, 0], sizes = [4, 1], strides = [1, 1]} : vector<8x1xf32> to vector<4x1xf32>
    %99 = vector.shape_cast %98 : vector<4x1xf32> to vector<1x4x1xf32>
    %cst_32 = arith.constant dense<0.000000e+00> : vector<1xf32>
    %100 = vector.multi_reduction <add>, %99, %cst_32 [1, 2] : vector<1x4x1xf32> to vector<1xf32>
    %101 = vector.shape_cast %100 : vector<1xf32> to vector<1x1x1xf32>
    %102 = vector.extract %101[0, 0, 0] : f32 from vector<1x1x1xf32>
    %cst_33 = arith.constant 9.765625E-4 : f32
    %103 = arith.mulf %97, %cst_33 : f32
    %cst_34 = arith.constant 9.765625E-4 : f32
    %104 = arith.mulf %102, %cst_34 : f32
    %105 = arith.mulf %103, %103 : f32
    %106 = arith.subf %104, %105 : f32
    %cst_35 = arith.constant 9.99999974E-6 : f32
    %107 = arith.addf %106, %cst_35 : f32
    %108 = math.rsqrt %107 : f32
    %109 = vector.extract_strided_slice %2 {offsets = [0, 0], sizes = [4, 1], strides = [1, 1]} : vector<8x1xf32> to vector<4x1xf32>
    %110 = vector.broadcast %108 : f32 to vector<4x1xf32>
    %111 = arith.mulf %109, %110 : vector<4x1xf32>
    %112 = vector.extract_strided_slice %3 {offsets = [0, 0], sizes = [4, 1], strides = [1, 1]} : vector<8x1xf32> to vector<4x1xf32>
    %113 = vector.broadcast %103 : f32 to vector<4x1xf32>
    %114 = arith.mulf %113, %111 : vector<4x1xf32>
    %115 = arith.subf %112, %114 : vector<4x1xf32>
    %116 = vector.extract_strided_slice %87 {offsets = [0, 0], sizes = [4, 256], strides = [1, 1]} : vector<8x256xf32> to vector<4x256xf32>
    %117 = vector.broadcast %111 : vector<4x1xf32> to vector<4x256xf32>
    %118 = arith.mulf %116, %117 : vector<4x256xf32>
    %119 = vector.broadcast %115 : vector<4x1xf32> to vector<4x256xf32>
    %120 = arith.addf %118, %119 : vector<4x256xf32>
    %cst_36 = arith.constant 0.000000e+00 : f32
    %121 = vector.broadcast %cst_36 : f32 to vector<4x256xf32>
    %122 = arith.cmpf ogt, %120, %121 : vector<4x256xf32>
    %cst_37 = arith.constant 2.000000e-01 : f32
    %123 = vector.broadcast %cst_37 : f32 to vector<4x256xf32>
    %124 = arith.mulf %123, %120 : vector<4x256xf32>
    %125 = arith.select %122, %120, %124 : vector<4x256xi1>, vector<4x256xf32>
    %c0_38 = arith.constant 0 : index
    %c0_39 = arith.constant 0 : index
    %c256 = arith.constant 256 : index
    %126 = vector.load %arg4[%c0_38, %c0_39, %c256] : memref<1x8x512xf32, #tpu.memory_space<vmem>>, vector<1x4x256xf32>
    %127 = vector.shape_cast %126 : vector<1x4x256xf32> to vector<4x256xf32>
    %128 = vector.shape_cast %125 : vector<4x256xf32> to vector<1x4x256xf32>
    tpu.vector_store %arg4[%c0_38, %c0_39, %c256], %128 {strides = array<i32>} : memref<1x8x512xf32, #tpu.memory_space<vmem>>, vector<1x4x256xf32>,
    %129 = vector.extract_strided_slice %89 {offsets = [4, 0], sizes = [4, 1], strides = [1, 1]} : vector<8x1xf32> to vector<4x1xf32>
    %130 = vector.shape_cast %129 : vector<4x1xf32> to vector<1x4x1xf32>
    %cst_40 = arith.constant dense<0.000000e+00> : vector<1xf32>
    %131 = vector.multi_reduction <add>, %130, %cst_40 [1, 2] : vector<1x4x1xf32> to vector<1xf32>
    %132 = vector.shape_cast %131 : vector<1xf32> to vector<1x1x1xf32>
    %133 = vector.extract %132[0, 0, 0] : f32 from vector<1x1x1xf32>
    %134 = vector.extract_strided_slice %92 {offsets = [4, 0], sizes = [4, 1], strides = [1, 1]} : vector<8x1xf32> to vector<4x1xf32>
    %135 = vector.shape_cast %134 : vector<4x1xf32> to vector<1x4x1xf32>
    %cst_41 = arith.constant dense<0.000000e+00> : vector<1xf32>
    %136 = vector.multi_reduction <add>, %135, %cst_41 [1, 2] : vector<1x4x1xf32> to vector<1xf32>
    %137 = vector.shape_cast %136 : vector<1xf32> to vector<1x1x1xf32>
    %138 = vector.extract %137[0, 0, 0] : f32 from vector<1x1x1xf32>
    %cst_42 = arith.constant 9.765625E-4 : f32
    %139 = arith.mulf %133, %cst_42 : f32
    %cst_43 = arith.constant 9.765625E-4 : f32
    %140 = arith.mulf %138, %cst_43 : f32
    %141 = arith.mulf %139, %139 : f32
    %142 = arith.subf %140, %141 : f32
    %cst_44 = arith.constant 9.99999974E-6 : f32
    %143 = arith.addf %142, %cst_44 : f32
    %144 = math.rsqrt %143 : f32
    %145 = vector.extract_strided_slice %2 {offsets = [4, 0], sizes = [4, 1], strides = [1, 1]} : vector<8x1xf32> to vector<4x1xf32>
    %146 = vector.broadcast %144 : f32 to vector<4x1xf32>
    %147 = arith.mulf %145, %146 : vector<4x1xf32>
    %148 = vector.extract_strided_slice %3 {offsets = [4, 0], sizes = [4, 1], strides = [1, 1]} : vector<8x1xf32> to vector<4x1xf32>
    %149 = vector.broadcast %139 : f32 to vector<4x1xf32>
    %150 = arith.mulf %149, %147 : vector<4x1xf32>
    %151 = arith.subf %148, %150 : vector<4x1xf32>
    %152 = vector.extract_strided_slice %87 {offsets = [4, 0], sizes = [4, 256], strides = [1, 1]} : vector<8x256xf32> to vector<4x256xf32>
    %153 = vector.broadcast %147 : vector<4x1xf32> to vector<4x256xf32>
    %154 = arith.mulf %152, %153 : vector<4x256xf32>
    %155 = vector.broadcast %151 : vector<4x1xf32> to vector<4x256xf32>
    %156 = arith.addf %154, %155 : vector<4x256xf32>
    %cst_45 = arith.constant 0.000000e+00 : f32
    %157 = vector.broadcast %cst_45 : f32 to vector<4x256xf32>
    %158 = arith.cmpf ogt, %156, %157 : vector<4x256xf32>
    %cst_46 = arith.constant 2.000000e-01 : f32
    %159 = vector.broadcast %cst_46 : f32 to vector<4x256xf32>
    %160 = arith.mulf %159, %156 : vector<4x256xf32>
    %161 = arith.select %158, %156, %160 : vector<4x256xi1>, vector<4x256xf32>
    %c0_47 = arith.constant 0 : index
    %c4_48 = arith.constant 4 : index
    %c256_49 = arith.constant 256 : index
    %162 = vector.load %arg4[%c0_47, %c4_48, %c256_49] : memref<1x8x512xf32, #tpu.memory_space<vmem>>, vector<1x4x256xf32>
    %163 = vector.shape_cast %162 : vector<1x4x256xf32> to vector<4x256xf32>
    %164 = vector.shape_cast %161 : vector<4x256xf32> to vector<1x4x256xf32>
    tpu.vector_store %arg4[%c0_47, %c4_48, %c256_49], %164 {strides = array<i32>} : memref<1x8x512xf32, #tpu.memory_space<vmem>>, vector<1x4x256xf32>,
    return
  }
  func.func @transform_0(%arg0: i32) -> (i32, i32, i32) {
    %c0_i32 = arith.constant 0 : i32
    %c0_i32_0 = arith.constant 0 : i32
    %c0_i32_1 = arith.constant 0 : i32
    return %arg0, %c0_i32, %c0_i32_0 : i32, i32, i32
  }
  func.func @transform_1(%arg0: i32) -> (i32, i32) {
    %c0_i32 = arith.constant 0 : i32
    %c0_i32_0 = arith.constant 0 : i32
    %c0_i32_1 = arith.constant 0 : i32
    return %c0_i32, %c0_i32_0 : i32, i32
  }
  func.func @transform_2(%arg0: i32) -> (i32, i32) {
    %c0_i32 = arith.constant 0 : i32
    %c0_i32_0 = arith.constant 0 : i32
    %c0_i32_1 = arith.constant 0 : i32
    return %c0_i32, %c0_i32_0 : i32, i32
  }
  func.func @transform_3(%arg0: i32) -> (i32, i32, i32) {
    %c0_i32 = arith.constant 0 : i32
    %c0_i32_0 = arith.constant 0 : i32
    %c0_i32_1 = arith.constant 0 : i32
    return %arg0, %c0_i32, %c0_i32_0 : i32, i32, i32
  }
}

</mosaic_0001>

<llo_original>
// kernel: convsc_forward.1
$region0: #{convsc_forward.1}
  #allocation0 [shape = 'u32[]', space=smem, size = 0x4, offset = 0x4, fixed_abs, tag = 'smem constant byte address 0x4 - core index']
  #allocation1 [shape = 'u32[144,128]{1,0:T(1,128)}', space=vmem, size = 0x12000, scoped, tag = 'internal scratch']
  %s0 = inlined_call_operand.vmem [shape: bf16[2,36,512], index: 0, kind: input, shape index: {}]
  %s1 = inlined_call_operand.vmem [shape: bf16[8,36], index: 1, kind: input, shape index: {}]
  %s2 = inlined_call_operand.vmem [shape: f32[8,3], index: 2, kind: input, shape index: {}]
  %s3 = inlined_call_operand.vmem [shape: f32[2,8,512], index: 3, kind: output, shape index: {}]
  %s4 = sld [smem:[#allocation0]]
  $region45: #{convsc_forward.1} parent=0
    _
  %s6 = ssub.s32 1, %s4
  %s7 = scalar_select 0, %s6, %s4
  loop: start=0, step=1, limit=4
  $region2: #{convsc_forward.1} parent=0 // loop_pre_header
    _
  $region3: #{convsc_forward.1} parent=0 // loop_header
    %s9 = sphi 0, %s13
    %p10 = scmp.ge.s32.totalorder %s9, 4
    %s19 = sphi 0, %s21
    %s22 = sphi 0, %s19
    %s23 = sphi 0, %s22
    %s39 = sphi 0, %s23
    %s43 = sphi 0, %s43
    %s45 = sphi 0, %s43
    %s46 = sphi 0, %s45
    %s60 = sphi 0, %s46
    %s64 = sphi 0, %s64
    %s66 = sphi 0, %s64
    %s67 = sphi 0, %s66
    %s81 = sphi 0, %s67
    %s87 = sphi 0, %s89
    %s90 = sphi 0, %s87
    %s91 = sphi 0, %s90
    %s107 = sphi 0, %s91
  $region4: #{convsc_forward.1} parent=0 // loop_header_branch
    %12 = sbr.rel (%p10) target = $region8
  $region5: #{convsc_forward.1} parent=0 // loop_body
    %s14 = ssub.s32 %s9, 1
    %s15 = ssub.s32 %s9, 2
    %s16 = sadd.s32 %s9, 1
    %s17 = ssub.s32 %s9, %s16
    %p18 = scmp.eq.s32.totalorder %s17, 0
    %s20 = sadd.s32 %s19, 1
    %s21 = scalar_select %p18, %s19, %s20
    %p24 = pneg %p18
    %p25 = scmp.eq.s32.totalorder %s9, 1
    %p26 = por %p24, %p25
    %p27 = scmp.ne.s32.totalorder %s19, %s22
    %p28 = scmp.eq.s32.totalorder %s9, 0
    %p29 = por %p27, %p28
    %p30 = scmp.ne.s32.totalorder %s19, %s22
    %p31 = scmp.eq.s32.totalorder %s14, 1
    %p32 = por %p30, %p31
    %p33 = scmp.ne.s32.totalorder %s22, %s23
    %p34 = scmp.eq.s32.totalorder %s14, 0
    %p35 = por %p33, %p34
    %p36 = scmp.ne.s32.totalorder %s22, %s23
    %p37 = scmp.eq.s32.totalorder %s15, 1
    %p38 = por %p36, %p37
    %p40 = scmp.ne.s32.totalorder %s23, %s39
    %p41 = scmp.eq.s32.totalorder %s15, 0
    %p42 = por %p40, %p41
    %s44 = sadd.s32 %s43, 1
    %p47 = scmp.eq.s32.totalorder %s9, 1
    %p48 = scmp.ne.s32.totalorder %s43, %s45
    %p49 = scmp.eq.s32.totalorder %s9, 0
    %p50 = por %p48, %p49
    %p51 = scmp.ne.s32.totalorder %s43, %s45
    %p52 = scmp.eq.s32.totalorder %s14, 1
    %p53 = por %p51, %p52
    %p54 = scmp.ne.s32.totalorder %s45, %s46
    %p55 = scmp.eq.s32.totalorder %s14, 0
    %p56 = por %p54, %p55
    %p57 = scmp.ne.s32.totalorder %s45, %s46
    %p58 = scmp.eq.s32.totalorder %s15, 1
    %p59 = por %p57, %p58
    %p61 = scmp.ne.s32.totalorder %s46, %s60
    %p62 = scmp.eq.s32.totalorder %s15, 0
    %p63 = por %p61, %p62
    %s65 = sadd.s32 %s64, 1
    %p68 = scmp.eq.s32.totalorder %s9, 1
    %p69 = scmp.ne.s32.totalorder %s64, %s66
    %p70 = scmp.eq.s32.totalorder %s9, 0
    %p71 = por %p69, %p70
    %p72 = scmp.ne.s32.totalorder %s64, %s66
    %p73 = scmp.eq.s32.totalorder %s14, 1
    %p74 = por %p72, %p73
    %p75 = scmp.ne.s32.totalorder %s66, %s67
    %p76 = scmp.eq.s32.totalorder %s14, 0
    %p77 = por %p75, %p76
    %p78 = scmp.ne.s32.totalorder %s66, %s67
    %p79 = scmp.eq.s32.totalorder %s15, 1
    %p80 = por %p78, %p79
    %p82 = scmp.ne.s32.totalorder %s67, %s81
    %p83 = scmp.eq.s32.totalorder %s15, 0
    %p84 = por %p82, %p83
    %s85 = ssub.s32 %s9, %s16
    %p86 = scmp.eq.s32.totalorder %s85, 0
    %s88 = sadd.s32 %s87, 1
    %s89 = scalar_select %p86, %s87, %s88
    %p92 = pneg %p86
    %p93 = scmp.eq.s32.totalorder %s9, 1
    %p94 = por %p92, %p93
    %p95 = scmp.ne.s32.totalorder %s87, %s90
    %p96 = scmp.eq.s32.totalorder %s9, 0
    %p97 = por %p95, %p96
    %p98 = scmp.ne.s32.totalorder %s87, %s90
    %p99 = scmp.eq.s32.totalorder %s14, 1
    %p100 = por %p98, %p99
    %p101 = scmp.ne.s32.totalorder %s90, %s91
    %p102 = scmp.eq.s32.totalorder %s14, 0
    %p103 = por %p101, %p102
    %p104 = scmp.ne.s32.totalorder %s90, %s91
    %p105 = scmp.eq.s32.totalorder %s15, 1
    %p106 = por %p104, %p105
    %p108 = scmp.ne.s32.totalorder %s91, %s107
    %p109 = scmp.eq.s32.totalorder %s15, 0
    %p110 = por %p108, %p109
    %p111 = scmp.le.s32.totalorder 1, %s9
    %p112 = scmp.lt.s32.totalorder %s9, 3
    %p113 = pnand %p111, %p112
    %p114 = pneg %p113
    // Predicated region
    $region9: #{convsc_forward.1} parent=5 // pred_check
      _
    $region10: #{convsc_forward.1} parent=5 // pred_check_branch
      %116 = sbr.rel (%p113) target = $region12
    $region11: #{convsc_forward.1} parent=5 // pred_region
      %s117 = ssub.s32 %s9, 1
      // Predicated region
      $region13: #{convsc_forward.1} parent=11 // pred_check
        %p118 = pneg %p56
      $region14: #{convsc_forward.1} parent=11 // pred_check_branch
        %120 = sbr.rel (%p118) target = $region16
      $region15: #{convsc_forward.1} parent=11 // pred_region
        _
      $region16: #{convsc_forward.1} parent=11 // pred_fallthru
        _
      // Predicated region
      $region17: #{convsc_forward.1} parent=11 // pred_check
        %p121 = pneg %p77
      $region18: #{convsc_forward.1} parent=11 // pred_check_branch
        %123 = sbr.rel (%p121) target = $region20
      $region19: #{convsc_forward.1} parent=11 // pred_region
        _
      $region20: #{convsc_forward.1} parent=11 // pred_fallthru
        _
    $region12: #{convsc_forward.1} parent=5 // pred_fallthru
      _
    %p124 = scmp.lt.s32.totalorder %s9, 2
    // Predicated region
    $region21: #{convsc_forward.1} parent=5 // pred_check
      %p125 = pneg %p124
    $region22: #{convsc_forward.1} parent=5 // pred_check_branch
      %127 = sbr.rel (%p125) target = $region24
    $region23: #{convsc_forward.1} parent=5 // pred_region
      // Predicated region
      $region25: #{convsc_forward.1} parent=23 // pred_check
        %p128 = pneg %p29
      $region26: #{convsc_forward.1} parent=23 // pred_check_branch
        %130 = sbr.rel (%p128) target = $region28
      $region27: #{convsc_forward.1} parent=23 // pred_region
        %p131 = scmp.lt.s32.totalorder %s9, 1
        %s132 = scalar_select %p131, %s9, 1
        %s133 = smul.addr %s132, 20
        %s134 = smul.addr %s133, 4
        %s135 = scalar_lea.vmem %s0, %s134
      $region28: #{convsc_forward.1} parent=23 // pred_fallthru
        _
    $region24: #{convsc_forward.1} parent=5 // pred_fallthru
      _
    %p136 = scmp.le.s32.totalorder 1, %s9
    %p137 = scmp.lt.s32.totalorder %s9, 3
    %p138 = pnand %p136, %p137
    %p139 = pneg %p138
    // Predicated region
    $region29: #{convsc_forward.1} parent=5 // pred_check
      _
    $region30: #{convsc_forward.1} parent=5 // pred_check_branch
      %141 = sbr.rel (%p138) target = $region32
    $region31: #{convsc_forward.1} parent=5 // pred_region
      %s142 = ssub.s32 %s9, 1
      %p143 = scmp.lt.s32.totalorder %s14, 1
      %s144 = scalar_select %p143, %s14, 1
      %s145 = smul.addr %s144, 20
      %s146 = smul.addr %s145, 4
      %s147 = scalar_lea.vmem %s0, %s146
      %p148 = pneg %p35
      %p149 = pneg %p32
      %p150 = pneg %p56
      %p151 = pneg %p53
      %p152 = pneg %p77
      %p153 = pneg %p74
      %p154 = pneg %p103
      %p155 = pneg %p100
      %p156 = scmp.lt.s32.totalorder %s14, 1
      %s157 = scalar_select %p156, %s14, 1
      %s158 = smul.addr %s157, 4
      %s159 = smul.addr %s158, 8
      %s160 = scalar_lea.vmem %s3, %s159
      %p161 = scmp.lt.s32.totalorder %s14, 1
      %s162 = scalar_select %p161, %s14, 1
      %s163 = smul.addr %s162, 20
      %s164 = smul.addr %s163, 4
      %s165 = scalar_lea.vmem %s0, %s164
      %p166 = scmp.lt.s32.totalorder %s14, 1
      %s167 = scalar_select %p166, %s14, 1
      %s168 = smul.addr %s167, 4
      %s169 = smul.addr %s168, 8
      %s170 = scalar_lea.vmem %s3, %s169
      %v172 = vld [vmem:[%s1] sm:$0xf]
      %v173 = vld [vmem:[%s2] sm:$0xff]
      %v174 = vld [vmem:[%s165] sm:$0xff]
      %v175 = vld [vmem:[%s165 + $0x8] sm:$0xff]
      %v176 = vld [vmem:[%s165 + $0x10] sm:$0xff]
      %v177 = vld [vmem:[%s165 + $0x18] sm:$0xff]
      %v178 = vld [vmem:[%s165 + $0x20] sm:$0xff]
      %v179 = vld [vmem:[%s165 + $0x28] sm:$0xff]
      %v180 = vld [vmem:[%s165 + $0x30] sm:$0xff]
      %v181 = vld [vmem:[%s165 + $0x38] sm:$0xff]
      %v182 = vld [vmem:[%s165 + $0x40] sm:$0x33]
      %v183 = vld [vmem:[%s165 + $0x48] sm:$0x33]
      %185 = vset.pattern.permute.xlu0 0
      %186 = vperm.xlu0 %185, %v173
      %v187 = vpop.permute.xlu0 %186
      %v199 = vunpack.c.l.b16 %v174
      %v200 = vunpack.c.h.b16 %v174
      %v201 = vunpack.c.l.b16 %v175
      %v202 = vunpack.c.h.b16 %v175
      %v203 = vunpack.c.l.b16 %v176
      %v204 = vunpack.c.h.b16 %v176
      %v205 = vunpack.c.l.b16 %v177
      %v206 = vunpack.c.h.b16 %v177
      %v207 = vunpack.c.l.b16 %v178
      %v208 = vunpack.c.h.b16 %v178
      %v209 = vunpack.c.l.b16 %v179
      %v210 = vunpack.c.h.b16 %v179
      %v211 = vunpack.c.l.b16 %v180
      %v212 = vunpack.c.h.b16 %v180
      %v213 = vunpack.c.l.b16 %v181
      %v214 = vunpack.c.h.b16 %v181
      %v215 = vunpack.c.l.b16 %v182
      %v216 = vunpack.c.h.b16 %v182
      %v217 = vunpack.c.l.b16 %v183
      %v218 = vunpack.c.h.b16 %v183
      %v219 = vpack.c.b16 %v203, %v199
      %v220 = vpack.c.b16 %v204, %v200
      %v221 = vpack.c.b16 %v205, %v201
      %v222 = vpack.c.b16 %v206, %v202
      %v223 = vpack.c.b16 %v211, %v207
      %v224 = vpack.c.b16 %v212, %v208
      %v225 = vpack.c.b16 %v213, %v209
      %v226 = vpack.c.b16 %v214, %v210
      %v227 = vpack.c.b16 %v215, %v215
      %v228 = vpack.c.b16 %v216, %v216
      %v229 = vpack.c.b16 %v217, %v217
      %v230 = vpack.c.b16 %v218, %v218
      %vm239 = vcmask 293888
      %v241 = vsel %vm239, %v172, 0
      %vm243 = vcmask 1041408
      %v245 = vsel %vm243, %v227, 0
      %v248 = vsel %vm243, %v228, 0
      %v251 = vsel %vm243, %v229, 0
      %v254 = vsel %vm243, %v230, 0
      %256 = vmatprep.subr.bf16.mxu0 %v220
      %257 = vmatpush1.bf16.msra.mxu0 %v219
      %258 = vmatprep.subr.bf16.mxu0 %v224
      %259 = vmatpush1.bf16.msra.mxu0 %v223
      %260 = vmatprep.subr.bf16.mxu0 %v248
      %261 = vmatpush1.bf16.msra.mxu0 %v245
      %262 = vmatprep.subr.bf16.mxu0 0
      %263 = vmatpush1.bf16.msra.mxu0 0
      %264 = vmatprep.subr.bf16.mxu0 0
      %265 = vmatpush1.bf16.msra.mxu0 0
      %266 = vmatprep.subr.bf16.mxu0 0
      %267 = vmatpush1.bf16.msra.mxu0 0
      %268 = vmatprep.subr.bf16.mxu0 0
      %269 = vmatpush1.bf16.msra.mxu0 0
      %270 = vmatprep.subr.bf16.mxu0 0
      %271 = vmatpush1.bf16.msra.mxu0 0
      %272 = vmatprep.subr.bf16.mxu0 0
      %273 = vmatpush1.bf16.msra.mxu0 0
      %274 = vmatprep.subr.bf16.mxu0 0
      %275 = vmatpush1.bf16.msra.mxu0 0
      %276 = vmatprep.subr.bf16.mxu0 0
      %277 = vmatpush1.bf16.msra.mxu0 0
      %278 = vmatprep.subr.bf16.mxu0 0
      %279 = vmatpush1.bf16.msra.mxu0 0
      %280 = vmatprep.subr.bf16.mxu0 0
      %281 = vmatpush1.bf16.msra.mxu0 0
      %282 = vmatprep.subr.bf16.mxu0 0
      %283 = vmatpush1.bf16.msra.mxu0 0
      %284 = vmatprep.subr.bf16.mxu0 0
      %285 = vmatpush1.bf16.msra.mxu0 0
      %286 = vmatprep.subr.bf16.mxu0 0
      %287 = vmatpush1.bf16.msra.mxu0 0
      %288 = vmatprep.mubr.bf16.mxu0 0
      %289 = vmatmul.mubr.bf16.gmra.mrb[0].mxu0 %v241
      %v290 = vpop.f32.mrb[0].mxu0
      %v291 = vadd.f32 %v187, %v290
      %v292 = vpop.f32.mrb[0].mxu0
      %v293 = vadd.f32 %v187, %v292
      %v294 = vpop.f32.mrb[0].mxu0
      %v295 = vpop.f32.mrb[0].mxu0
      %296 = vdwg.mxu0
      %297 = vmatprep.subr.bf16.mxu0 %v222
      %298 = vmatpush1.bf16.msra.mxu0 %v221
      %299 = vmatprep.subr.bf16.mxu0 %v226
      %300 = vmatpush1.bf16.msra.mxu0 %v225
      %301 = vmatprep.subr.bf16.mxu0 %v254
      %302 = vmatpush1.bf16.msra.mxu0 %v251
      %303 = vmatprep.subr.bf16.mxu0 0
      %304 = vmatpush1.bf16.msra.mxu0 0
      %305 = vmatprep.subr.bf16.mxu0 0
      %306 = vmatpush1.bf16.msra.mxu0 0
      %307 = vmatprep.subr.bf16.mxu0 0
      %308 = vmatpush1.bf16.msra.mxu0 0
      %309 = vmatprep.subr.bf16.mxu0 0
      %310 = vmatpush1.bf16.msra.mxu0 0
      %311 = vmatprep.subr.bf16.mxu0 0
      %312 = vmatpush1.bf16.msra.mxu0 0
      %313 = vmatprep.subr.bf16.mxu0 0
      %314 = vmatpush1.bf16.msra.mxu0 0
      %315 = vmatprep.subr.bf16.mxu0 0
      %316 = vmatpush1.bf16.msra.mxu0 0
      %317 = vmatprep.subr.bf16.mxu0 0
      %318 = vmatpush1.bf16.msra.mxu0 0
      %319 = vmatprep.subr.bf16.mxu0 0
      %320 = vmatpush1.bf16.msra.mxu0 0
      %321 = vmatprep.subr.bf16.mxu0 0
      %322 = vmatpush1.bf16.msra.mxu0 0
      %323 = vmatprep.subr.bf16.mxu0 0
      %324 = vmatpush1.bf16.msra.mxu0 0
      %325 = vmatprep.subr.bf16.mxu0 0
      %326 = vmatpush1.bf16.msra.mxu0 0
      %327 = vmatprep.subr.bf16.mxu0 0
      %328 = vmatpush1.bf16.msra.mxu0 0
      %329 = vmatprep.mubr.bf16.mxu0 0
      %330 = vmatmul.mubr.bf16.gmra.mrb[0].mxu0 %v241
      %v331 = vpop.f32.mrb[0].mxu0
      %v332 = vadd.f32 %v187, %v331
      %v333 = vpop.f32.mrb[0].mxu0
      %v334 = vadd.f32 %v187, %v333
      %v335 = vpop.f32.mrb[0].mxu0
      %v336 = vpop.f32.mrb[0].mxu0
      %337 = vdwg.mxu0
      %v338 = vadd.f32 %v291, %v293
      %339 = vadd.xlane.f32.xlu0 %v338
      %v340 = vpop.xlane.xlu0 %339
      %v341 = vmul.f32 %v291, %v291
      %v342 = vmul.f32 %v293, %v293
      %v343 = vadd.f32 %v341, %v342
      %344 = vadd.xlane.f32.xlu0 %v343
      %v345 = vpop.xlane.xlu0 %344
      %vm346 = vcmask 3072
      %v347 = vsel %vm346, %v340, 0.0
      %348 = vadd.xlane.f32.xlu0 %v347
      %v349 = vpop.xlane.xlu0 %348
      %v350 = vrot.slane %v349, 4
      %v351 = vadd.f32 %v349, %v350
      %v352 = vrot.slane %v351, 2
      %v353 = vadd.f32 %v351, %v352
      %v354 = vrot.slane %v353, 1
      %v355 = vadd.f32 %v353, %v354
      %s356 = vtos %v355
      %v357 = vsel %vm346, %v345, 0.0
      %358 = vadd.xlane.f32.xlu0 %v357
      %v359 = vpop.xlane.xlu0 %358
      %v360 = vrot.slane %v359, 4
      %v361 = vadd.f32 %v359, %v360
      %v362 = vrot.slane %v361, 2
      %v363 = vadd.f32 %v361, %v362
      %v364 = vrot.slane %v363, 1
      %v365 = vadd.f32 %v363, %v364
      %s366 = vtos %v365
      %s367 = smul.f32 %s356, 0.0009765625
      %s368 = smul.f32 %s366, 0.0009765625
      %s369 = smul.f32 %s367, %s367
      %s370 = ssub.f32 %s368, %s369
      %s371 = sadd.f32 %s370, 1e-05
      %v372 = vstv %s371
      %v373 = vrsqrt.pop %v372
      %s374 = vtos %v373
      %v375 = vstv %s374
      %v376 = vmul.f32 %v173, %v375
      %v377 = vstv %s367
      %v378 = vmul.f32 %v377, %v376
      %380 = vrot.lane.b32.xlu0 %v378, 1
      %v381 = vpop.permute.xlu0 %380
      %v383 = vsub.f32 %v173, %v381
      %385 = vset.pattern.permute.xlu0 1
      %386 = vperm.xlu0 %385, %v376
      %v387 = vpop.permute.xlu0 %386
      %v389 = vmul.f32 %v291, %v387
      %v390 = vmul.f32 %v293, %v387
      %392 = vset.pattern.permute.xlu0 2
      %393 = vperm.xlu0 %392, %v383
      %v394 = vpop.permute.xlu0 %393
      %v396 = vadd.f32 %v389, %v394
      %v397 = vadd.f32 %v390, %v394
      %vm398 = vcmp.gt.f32.partialorder %v396, 0.0
      %vm399 = vcmp.gt.f32.partialorder %v397, 0.0
      %v400 = vmul.f32 %v396, 0.2
      %v401 = vmul.f32 %v397, 0.2
      %v402 = vsel %vm398, %v396, %v400
      %v403 = vsel %vm399, %v397, %v401
      %404 = vst [vmem:[%s170] sm:$0xf] %v402
      %405 = vst [vmem:[%s170 + $0x8] sm:$0xf] %v403
      %v407 = vrot.slane %v340, 4
      %v409 = vsel %vm346, %v407, 0.0
      %410 = vadd.xlane.f32.xlu0 %v409
      %v411 = vpop.xlane.xlu0 %410
      %v412 = vrot.slane %v411, 4
      %v413 = vadd.f32 %v411, %v412
      %v414 = vrot.slane %v413, 2
      %v415 = vadd.f32 %v413, %v414
      %v416 = vrot.slane %v415, 1
      %v417 = vadd.f32 %v415, %v416
      %s418 = vtos %v417
      %v420 = vrot.slane %v345, 4
      %v422 = vsel %vm346, %v420, 0.0
      %423 = vadd.xlane.f32.xlu0 %v422
      %v424 = vpop.xlane.xlu0 %423
      %v425 = vrot.slane %v424, 4
      %v426 = vadd.f32 %v424, %v425
      %v427 = vrot.slane %v426, 2
      %v428 = vadd.f32 %v426, %v427
      %v429 = vrot.slane %v428, 1
      %v430 = vadd.f32 %v428, %v429
      %s431 = vtos %v430
      %s432 = smul.f32 %s418, 0.0009765625
      %s433 = smul.f32 %s431, 0.0009765625
      %s434 = smul.f32 %s432, %s432
      %s435 = ssub.f32 %s433, %s434
      %s436 = sadd.f32 %s435, 1e-05
      %v437 = vstv %s436
      %v438 = vrsqrt.pop %v437
      %s439 = vtos %v438
      %v440 = vstv %s439
      %v441 = vmul.f32 %v173, %v440
      %v442 = vstv %s432
      %v443 = vmul.f32 %v442, %v441
      %445 = vrot.lane.b32.xlu0 %v443, 1
      %v446 = vpop.permute.xlu0 %445
      %v448 = vsub.f32 %v173, %v446
      %450 = vset.pattern.permute.xlu0 1
      %451 = vperm.xlu0 %450, %v441
      %v452 = vpop.permute.xlu0 %451
      %v454 = vmul.f32 %v291, %v452
      %v455 = vmul.f32 %v293, %v452
      %457 = vset.pattern.permute.xlu0 2
      %458 = vperm.xlu0 %457, %v448
      %v459 = vpop.permute.xlu0 %458
      %v461 = vadd.f32 %v454, %v459
      %v462 = vadd.f32 %v455, %v459
      %vm463 = vcmp.gt.f32.partialorder %v461, 0.0
      %vm464 = vcmp.gt.f32.partialorder %v462, 0.0
      %v465 = vmul.f32 %v461, 0.2
      %v466 = vmul.f32 %v462, 0.2
      %v467 = vsel %vm463, %v461, %v465
      %v468 = vsel %vm464, %v462, %v466
      %469 = vst [vmem:[%s170] sm:$0xf0] %v467
      %470 = vst [vmem:[%s170 + $0x8] sm:$0xf0] %v468
      %v471 = vadd.f32 %v332, %v334
      %472 = vadd.xlane.f32.xlu0 %v471
      %v473 = vpop.xlane.xlu0 %472
      %v474 = vmul.f32 %v332, %v332
      %v475 = vmul.f32 %v334, %v334
      %v476 = vadd.f32 %v474, %v475
      %477 = vadd.xlane.f32.xlu0 %v476
      %v478 = vpop.xlane.xlu0 %477
      %v479 = vsel %vm346, %v473, 0.0
      %480 = vadd.xlane.f32.xlu0 %v479
      %v481 = vpop.xlane.xlu0 %480
      %v482 = vrot.slane %v481, 4
      %v483 = vadd.f32 %v481, %v482
      %v484 = vrot.slane %v483, 2
      %v485 = vadd.f32 %v483, %v484
      %v486 = vrot.slane %v485, 1
      %v487 = vadd.f32 %v485, %v486
      %s488 = vtos %v487
      %v489 = vsel %vm346, %v478, 0.0
      %490 = vadd.xlane.f32.xlu0 %v489
      %v491 = vpop.xlane.xlu0 %490
      %v492 = vrot.slane %v491, 4
      %v493 = vadd.f32 %v491, %v492
      %v494 = vrot.slane %v493, 2
      %v495 = vadd.f32 %v493, %v494
      %v496 = vrot.slane %v495, 1
      %v497 = vadd.f32 %v495, %v496
      %s498 = vtos %v497
      %s499 = smul.f32 %s488, 0.0009765625
      %s500 = smul.f32 %s498, 0.0009765625
      %s501 = smul.f32 %s499, %s499
      %s502 = ssub.f32 %s500, %s501
      %s503 = sadd.f32 %s502, 1e-05
      %v504 = vstv %s503
      %v505 = vrsqrt.pop %v504
      %s506 = vtos %v505
      %v507 = vstv %s506
      %v508 = vmul.f32 %v173, %v507
      %v509 = vstv %s499
      %v510 = vmul.f32 %v509, %v508
      %512 = vrot.lane.b32.xlu0 %v510, 1
      %v513 = vpop.permute.xlu0 %512
      %v515 = vsub.f32 %v173, %v513
      %517 = vset.pattern.permute.xlu0 1
      %518 = vperm.xlu0 %517, %v508
      %v519 = vpop.permute.xlu0 %518
      %v521 = vmul.f32 %v332, %v519
      %v522 = vmul.f32 %v334, %v519
      %524 = vset.pattern.permute.xlu0 2
      %525 = vperm.xlu0 %524, %v515
      %v526 = vpop.permute.xlu0 %525
      %v528 = vadd.f32 %v521, %v526
      %v529 = vadd.f32 %v522, %v526
      %vm530 = vcmp.gt.f32.partialorder %v528, 0.0
      %vm531 = vcmp.gt.f32.partialorder %v529, 0.0
      %v532 = vmul.f32 %v528, 0.2
      %v533 = vmul.f32 %v529, 0.2
      %v534 = vsel %vm530, %v528, %v532
      %v535 = vsel %vm531, %v529, %v533
      %536 = vst [vmem:[%s170 + $0x10] sm:$0xf] %v534
      %537 = vst [vmem:[%s170 + $0x18] sm:$0xf] %v535
      %v539 = vrot.slane %v473, 4
      %v541 = vsel %vm346, %v539, 0.0
      %542 = vadd.xlane.f32.xlu0 %v541
      %v543 = vpop.xlane.xlu0 %542
      %v544 = vrot.slane %v543, 4
      %v545 = vadd.f32 %v543, %v544
      %v546 = vrot.slane %v545, 2
      %v547 = vadd.f32 %v545, %v546
      %v548 = vrot.slane %v547, 1
      %v549 = vadd.f32 %v547, %v548
      %s550 = vtos %v549
      %v552 = vrot.slane %v478, 4
      %v554 = vsel %vm346, %v552, 0.0
      %555 = vadd.xlane.f32.xlu0 %v554
      %v556 = vpop.xlane.xlu0 %555
      %v557 = vrot.slane %v556, 4
      %v558 = vadd.f32 %v556, %v557
      %v559 = vrot.slane %v558, 2
      %v560 = vadd.f32 %v558, %v559
      %v561 = vrot.slane %v560, 1
      %v562 = vadd.f32 %v560, %v561
      %s563 = vtos %v562
      %s564 = smul.f32 %s550, 0.0009765625
      %s565 = smul.f32 %s563, 0.0009765625
      %s566 = smul.f32 %s564, %s564
      %s567 = ssub.f32 %s565, %s566
      %s568 = sadd.f32 %s567, 1e-05
      %v569 = vstv %s568
      %v570 = vrsqrt.pop %v569
      %s571 = vtos %v570
      %v572 = vstv %s571
      %v573 = vmul.f32 %v173, %v572
      %v574 = vstv %s564
      %v575 = vmul.f32 %v574, %v573
      %577 = vrot.lane.b32.xlu0 %v575, 1
      %v578 = vpop.permute.xlu0 %577
      %v580 = vsub.f32 %v173, %v578
      %582 = vset.pattern.permute.xlu0 1
      %583 = vperm.xlu0 %582, %v573
      %v584 = vpop.permute.xlu0 %583
      %v586 = vmul.f32 %v332, %v584
      %v587 = vmul.f32 %v334, %v584
      %589 = vset.pattern.permute.xlu0 2
      %590 = vperm.xlu0 %589, %v580
      %v591 = vpop.permute.xlu0 %590
      %v593 = vadd.f32 %v586, %v591
      %v594 = vadd.f32 %v587, %v591
      %vm595 = vcmp.gt.f32.partialorder %v593, 0.0
      %vm596 = vcmp.gt.f32.partialorder %v594, 0.0
      %v597 = vmul.f32 %v593, 0.2
      %v598 = vmul.f32 %v594, 0.2
      %v599 = vsel %vm595, %v593, %v597
      %v600 = vsel %vm596, %v594, %v598
      %601 = vst [vmem:[%s170 + $0x10] sm:$0xf0] %v599
      %602 = vst [vmem:[%s170 + $0x18] sm:$0xf0] %v600
      %p603 = scmp.lt.s32.totalorder %s14, 1
      %s604 = scalar_select %p603, %s14, 1
      %s605 = smul.addr %s604, 4
      %s606 = smul.addr %s605, 8
      %s607 = scalar_lea.vmem %s3, %s606
      // Predicated region
      $region33: #{convsc_forward.1} parent=31 // pred_check
        %p608 = pneg %p100
      $region34: #{convsc_forward.1} parent=31 // pred_check_branch
        %610 = sbr.rel (%p608) target = $region36
      $region35: #{convsc_forward.1} parent=31 // pred_region
        _
      $region36: #{convsc_forward.1} parent=31 // pred_fallthru
        _
    $region32: #{convsc_forward.1} parent=5 // pred_fallthru
      _
    %p611 = scmp.le.s32.totalorder 2, %s9
    // Predicated region
    $region37: #{convsc_forward.1} parent=5 // pred_check
      %p612 = pneg %p611
    $region38: #{convsc_forward.1} parent=5 // pred_check_branch
      %614 = sbr.rel (%p612) target = $region40
    $region39: #{convsc_forward.1} parent=5 // pred_region
      %s615 = ssub.s32 %s9, 2
      // Predicated region
      $region41: #{convsc_forward.1} parent=39 // pred_check
        %p616 = pneg %p106
      $region42: #{convsc_forward.1} parent=39 // pred_check_branch
        %618 = sbr.rel (%p616) target = $region44
      $region43: #{convsc_forward.1} parent=39 // pred_region
        %p619 = scmp.lt.s32.totalorder %s15, 1
        %s620 = scalar_select %p619, %s15, 1
        %s621 = smul.addr %s620, 4
        %s622 = smul.addr %s621, 8
        %s623 = scalar_lea.vmem %s3, %s622
      $region44: #{convsc_forward.1} parent=39 // pred_fallthru
        _
    $region40: #{convsc_forward.1} parent=5 // pred_fallthru
      _
  $region6: #{convsc_forward.1} parent=0 // loop_footer
    %s13 = sadd.s32 1, %s9
  $region7: #{convsc_forward.1} parent=0 // loop_footer_branch
    %8 = sbr.rel target = $region3
  $region8: #{convsc_forward.1} parent=0 // loop_exit
    _

</llo_original>
